<compile_context>
chip_gen: v6e
topology: v6e:2x2x1
jax: 0.10.0
libtpu: 0.0.40
codegen_flags: <defaults>
</compile_context>

<pallas_src>
import math

import jax
import jax.numpy as jnp
from jax.experimental import pallas as pl
from jax.experimental.pallas import tpu as pltpu


# ---------------------------------------------------------------------------
# Fused Pallas kernel: one grid step == one agent.
# ---------------------------------------------------------------------------
def _cma_kernel(idx_ref,              # (A,) int32 scalar-prefetch (consumed by the index_maps)
                scene_ref,            # (1, P, C_s)  = global_scene[scene_idx[a]]
                dyn_ref,              # (1, 1, C_d)  = dynamic_encoding[a]
                wsn_ref, bsn_ref,     # (C_s, E), (1, E)
                wdf_ref, bdf_ref,     # (C_d, E), (1, E)
                wfc_ref, bfc_ref,     # (1, E),   (1, 1)
                out_ref):             # (1, 1, C_s)
    del idx_ref  # the gather was already done by the BlockSpec index_map

    scene = scene_ref[0]              # (P, C_s) f32
    dyn = dyn_ref[0]                  # (1, C_d) f32

    # embed_sn / embed_df: bf16 MXU matmuls with f32 accumulation + f32 bias.
    att1 = jnp.dot(scene.astype(jnp.bfloat16),
                   wsn_ref[...].astype(jnp.bfloat16),
                   preferred_element_type=jnp.float32) + bsn_ref[...]      # (P, E)
    att2 = jnp.dot(dyn.astype(jnp.bfloat16),
                   wdf_ref[...].astype(jnp.bfloat16),
                   preferred_element_type=jnp.float32) + bdf_ref[...]      # (1, E)

    fusion = jnp.maximum(att1 + att2, 0.0)                                 # (P, E)

    # fc (E -> 1) as an f32 lane reduction, then softmax over the pixel axis
    # (dim=1 of the PyTorch module).
    logits = jnp.sum(fusion * wfc_ref[...], axis=-1, keepdims=True)        # (P, 1)
    logits = logits + bfc_ref[...]
    m = jnp.max(logits, axis=0, keepdims=True)
    e = jnp.exp(logits - m)
    alpha = e / jnp.sum(e, axis=0, keepdims=True)                          # (P, 1)

    # attention-weighted scene encoding (f32 scene, not the bf16 copy).
    out_ref[0] = jnp.sum(alpha * scene, axis=0, keepdims=True)             # (1, C_s)


# ---------------------------------------------------------------------------
# Host-facing wrapper (single pallas_call).
# ---------------------------------------------------------------------------
def cross_modal_attention(global_scene, scene_idx, dynamic_encoding, params):
    S, P, C_s = global_scene.shape
    A, C_d = dynamic_encoding.shape
    E = params["w_sn"].shape[1]

    dyn3 = dynamic_encoding.reshape(A, 1, C_d)
    b_sn = params["b_sn"].reshape(1, E)
    b_df = params["b_df"].reshape(1, E)
    w_fc = params["w_fc"].reshape(1, E)
    b_fc = params["b_fc"].reshape(1, 1)

    grid_spec = pltpu.PrefetchScalarGridSpec(
        num_scalar_prefetch=1,
        grid=(A,),
        in_specs=[
            # Per-agent scene gather: data-dependent block index read from the
            # scalar-prefetched scene_idx (SMEM).
            pl.BlockSpec((1, P, C_s), lambda a, idx: (idx[a], 0, 0)),
            pl.BlockSpec((1, 1, C_d), lambda a, idx: (a, 0, 0)),
            # Weights / biases: constant block index -> VMEM-resident.
            pl.BlockSpec((C_s, E), lambda a, idx: (0, 0)),
            pl.BlockSpec((1, E), lambda a, idx: (0, 0)),
            pl.BlockSpec((C_d, E), lambda a, idx: (0, 0)),
            pl.BlockSpec((1, E), lambda a, idx: (0, 0)),
            pl.BlockSpec((1, E), lambda a, idx: (0, 0)),
            pl.BlockSpec((1, 1), lambda a, idx: (0, 0)),
        ],
        out_specs=pl.BlockSpec((1, 1, C_s), lambda a, idx: (a, 0, 0)),
    )

    flops = A * (2 * P * C_s * E + 2 * C_d * E + 2 * P * E + 6 * P * C_s)
    transcendentals = A * P
    bytes_accessed = 4 * (A * P * C_s + A * C_d + C_s * E + C_d * E
                          + 3 * E + 1 + A * C_s)

    out = pl.pallas_call(
        _cma_kernel,
        out_shape=jax.ShapeDtypeStruct((A, 1, C_s), jnp.float32),
        grid_spec=grid_spec,
        compiler_params=pltpu.CompilerParams(
            # Per-agent iterations are fully independent (disjoint output rows)
            # -> eligible for megacore sharding on v7x.
            dimension_semantics=("parallel",)),
        cost_estimate=pl.CostEstimate(flops=flops,
                                      transcendentals=transcendentals,
                                      bytes_accessed=bytes_accessed),
    )(scene_idx.astype(jnp.int32), global_scene, dyn3,
      params["w_sn"], b_sn, params["w_df"], b_df, w_fc, b_fc)

    return out.reshape(A, C_s)


# ---------------------------------------------------------------------------
# Parameters (PyTorch nn.Linear default init, weights stored pre-transposed
# as (in_features, out_features)).
# ---------------------------------------------------------------------------
def make_params(key, scene_channels, dynamics_features, embed_dim):
    k1, k2, k3 = jax.random.split(key, 3)

    def linear(k, fan_in, fan_out):
        kw, kb = jax.random.split(k)
        bound = 1.0 / math.sqrt(fan_in)
        w = jax.random.uniform(kw, (fan_in, fan_out), jnp.float32, -bound, bound)
        b = jax.random.uniform(kb, (fan_out,), jnp.float32, -bound, bound)
        return w, b

    w_sn, b_sn = linear(k1, scene_channels, embed_dim)
    w_df, b_df = linear(k2, dynamics_features, embed_dim)
    w_fc, b_fc = linear(k3, embed_dim, 1)
    return {"w_sn": w_sn, "b_sn": b_sn,
            "w_df": w_df, "b_df": b_df,
            "w_fc": w_fc.reshape(-1), "b_fc": b_fc}


# ---------------------------------------------------------------------------
# Pure-jnp references.
# ---------------------------------------------------------------------------
def cross_modal_attention_f32_ref(global_scene, scene_idx, dynamic_encoding, p):
    """Exact f32 PyTorch semantics."""
    hp = jax.lax.Precision.HIGHEST
    att1 = jnp.dot(global_scene, p["w_sn"], precision=hp) + p["b_sn"]      # (S,P,E)
    att2 = jnp.dot(dynamic_encoding, p["w_df"], precision=hp) + p["b_df"]  # (A,E)
    fusion = jnp.maximum(att1[scene_idx] + att2[:, None, :], 0.0)          # (A,P,E)
    logits = (jnp.sum(fusion * p["w_fc"][None, None, :], axis=-1, keepdims=True)
              + p["b_fc"])                                                 # (A,P,1)
    alpha = jax.nn.softmax(logits, axis=1)
    scene_rep = global_scene[scene_idx]                                    # (A,P,C_s)
    return jnp.sum(alpha * scene_rep, axis=1)                              # (A,C_s)


def cross_modal_attention_kernel_math_ref(global_scene, scene_idx,
                                          dynamic_encoding, p):
    """Same math as the Pallas kernel (bf16 MXU operands, f32 elsewhere)."""
    gs = global_scene[scene_idx]                                           # (A,P,C_s)
    att1 = jnp.dot(gs.astype(jnp.bfloat16), p["w_sn"].astype(jnp.bfloat16),
                   preferred_element_type=jnp.float32) + p["b_sn"]
    att2 = jnp.dot(dynamic_encoding.astype(jnp.bfloat16),
                   p["w_df"].astype(jnp.bfloat16),
                   preferred_element_type=jnp.float32) + p["b_df"]
    fusion = jnp.maximum(att1 + att2[:, None, :], 0.0)
    logits = (jnp.sum(fusion * p["w_fc"][None, None, :], axis=-1, keepdims=True)
              + p["b_fc"])
    alpha = jax.nn.softmax(logits, axis=1)
    return jnp.sum(alpha * gs, axis=1)


# ---------------------------------------------------------------------------
if __name__ == "__main__":
    # Small shapes consistent with DATF usage: global_scene is the flattened
    # CNN feature map (P = 8*8 pixels), one row of dynamic encoding per agent.
    scene_channels = 32      # C_s
    dynamics_features = 64   # C_d
    embed_dim = 32           # E
    num_scenes = 4           # S
    num_pixels = 64          # P
    num_agents = 8           # A

    key = jax.random.PRNGKey(0)
    kp, kg, kd, ki = jax.random.split(key, 4)
    params = make_params(kp, scene_channels, dynamics_features, embed_dim)
    global_scene = jax.random.normal(
        kg, (num_scenes, num_pixels, scene_channels), jnp.float32)
    dynamic_encoding = jax.random.normal(
        kd, (num_agents, dynamics_features), jnp.float32)
    scene_idx = jax.random.randint(ki, (num_agents,), 0, num_scenes, jnp.int32)

    out = cross_modal_attention(global_scene, scene_idx, dynamic_encoding, params)
    jax.block_until_ready(out)
    assert out.shape == (num_agents, scene_channels)

    # Tight check: kernel vs jnp reference with identical (bf16-MXU) math.
    ref_k = cross_modal_attention_kernel_math_ref(
        global_scene, scene_idx, dynamic_encoding, params)
    assert jnp.allclose(out, ref_k, atol=1e-4, rtol=1e-4), \
        float(jnp.max(jnp.abs(out - ref_k)))

    # Loose check: kernel vs exact f32 PyTorch semantics (bf16 MXU inputs
    # introduce ~1e-2 level differences).
    ref_f = cross_modal_attention_f32_ref(
        global_scene, scene_idx, dynamic_encoding, params)
    assert jnp.allclose(out, ref_f, atol=5e-2, rtol=5e-2), \
        float(jnp.max(jnp.abs(out - ref_f)))

    print("KERNEL_OK")
</pallas_src>

<mosaic_0001>
module attributes {stable_mosaic.version = 11 : i64} {
  func.func @_cma_kernel(%arg0: i32, %arg1: memref<8xi32, #tpu.memory_space<smem>>, %arg2: memref<1x64x32xf32, #tpu.memory_space<vmem>>, %arg3: memref<1x1x64xf32, #tpu.memory_space<vmem>>, %arg4: memref<32x32xf32, #tpu.memory_space<vmem>>, %arg5: memref<1x32xf32, #tpu.memory_space<vmem>>, %arg6: memref<64x32xf32, #tpu.memory_space<vmem>>, %arg7: memref<1x32xf32, #tpu.memory_space<vmem>>, %arg8: memref<1x32xf32, #tpu.memory_space<vmem>>, %arg9: memref<1x1xf32, #tpu.memory_space<vmem>>, %arg10: memref<1x1x32xf32, #tpu.memory_space<vmem>>) attributes {dimension_semantics = [#tpu.dimension_semantics<parallel>], iteration_bounds = array<i64: 8>, scalar_prefetch = 1 : i64, scratch_operands = 0 : i64, tpu.core_type = #tpu.core_type<tc>, window_params = [{transform_indices = @transform_0, window_bounds = array<i64: 1, 64, 32>}, {transform_indices = @transform_1, window_bounds = array<i64: 1, 1, 64>}, {pipeline_mode = #tpu.pipeline_mode<synchronous>, transform_indices = @transform_2, window_bounds = array<i64: 32, 32>}, {pipeline_mode = #tpu.pipeline_mode<synchronous>, transform_indices = @transform_3, window_bounds = array<i64: 1, 32>}, {pipeline_mode = #tpu.pipeline_mode<synchronous>, transform_indices = @transform_4, window_bounds = array<i64: 64, 32>}, {pipeline_mode = #tpu.pipeline_mode<synchronous>, transform_indices = @transform_5, window_bounds = array<i64: 1, 32>}, {pipeline_mode = #tpu.pipeline_mode<synchronous>, transform_indices = @transform_6, window_bounds = array<i64: 1, 32>}, {pipeline_mode = #tpu.pipeline_mode<synchronous>, transform_indices = @transform_7, window_bounds = array<i64: 1, 1>}, {transform_indices = @transform_8, window_bounds = array<i64: 1, 1, 32>}]} {
    %c0 = arith.constant 0 : index
    %c0_0 = arith.constant 0 : index
    %c0_1 = arith.constant 0 : index
    %0 = vector.load %arg2[%c0, %c0_0, %c0_1] : memref<1x64x32xf32, #tpu.memory_space<vmem>>, vector<1x64x32xf32>
    %1 = vector.shape_cast %0 : vector<1x64x32xf32> to vector<64x32xf32>
    %c0_2 = arith.constant 0 : index
    %c0_3 = arith.constant 0 : index
    %c0_4 = arith.constant 0 : index
    %2 = vector.load %arg3[%c0_2, %c0_3, %c0_4] : memref<1x1x64xf32, #tpu.memory_space<vmem>>, vector<1x1x64xf32>
    %3 = vector.shape_cast %2 : vector<1x1x64xf32> to vector<1x64xf32>
    %4 = arith.truncf %1 : vector<64x32xf32> to vector<64x32xbf16>
    %c0_5 = arith.constant 0 : index
    %c0_6 = arith.constant 0 : index
    %5 = vector.load %arg4[%c0_5, %c0_6] : memref<32x32xf32, #tpu.memory_space<vmem>>, vector<32x32xf32>
    %6 = arith.truncf %5 : vector<32x32xf32> to vector<32x32xbf16>
    %cst = arith.constant dense<0.000000e+00> : vector<64x32xf32>
    %7 = tpu.matmul %4, %6, %cst {dimension_numbers = #tpu.dot_dimension_numbers<[1], [0], [0], [1], [0, 0, 1, 1], [], []>} : vector<64x32xbf16>, vector<32x32xbf16>, vector<64x32xf32> -> vector<64x32xf32>
    %c0_7 = arith.constant 0 : index
    %c0_8 = arith.constant 0 : index
    %8 = vector.load %arg5[%c0_7, %c0_8] : memref<1x32xf32, #tpu.memory_space<vmem>>, vector<1x32xf32>
    %9 = vector.broadcast %8 : vector<1x32xf32> to vector<64x32xf32>
    %10 = arith.addf %7, %9 : vector<64x32xf32>
    %11 = arith.truncf %3 : vector<1x64xf32> to vector<1x64xbf16>
    %c0_9 = arith.constant 0 : index
    %c0_10 = arith.constant 0 : index
    %12 = vector.load %arg6[%c0_9, %c0_10] : memref<64x32xf32, #tpu.memory_space<vmem>>, vector<64x32xf32>
    %13 = arith.truncf %12 : vector<64x32xf32> to vector<64x32xbf16>
    %cst_11 = arith.constant dense<0.000000e+00> : vector<1x32xf32>
    %14 = tpu.matmul %11, %13, %cst_11 {dimension_numbers = #tpu.dot_dimension_numbers<[1], [0], [0], [1], [0, 0, 1, 1], [], []>} : vector<1x64xbf16>, vector<64x32xbf16>, vector<1x32xf32> -> vector<1x32xf32>
    %c0_12 = arith.constant 0 : index
    %c0_13 = arith.constant 0 : index
    %15 = vector.load %arg7[%c0_12, %c0_13] : memref<1x32xf32, #tpu.memory_space<vmem>>, vector<1x32xf32>
    %16 = arith.addf %14, %15 : vector<1x32xf32>
    %17 = vector.broadcast %16 : vector<1x32xf32> to vector<64x32xf32>
    %18 = arith.addf %10, %17 : vector<64x32xf32>
    %cst_14 = arith.constant 0.000000e+00 : f32
    %19 = vector.broadcast %cst_14 : f32 to vector<64x32xf32>
    %20 = arith.maximumf %18, %19 : vector<64x32xf32>
    %c0_15 = arith.constant 0 : index
    %c0_16 = arith.constant 0 : index
    %21 = vector.load %arg8[%c0_15, %c0_16] : memref<1x32xf32, #tpu.memory_space<vmem>>, vector<1x32xf32>
    %22 = vector.broadcast %21 : vector<1x32xf32> to vector<64x32xf32>
    %23 = arith.mulf %20, %22 : vector<64x32xf32>
    %cst_17 = arith.constant dense<0.000000e+00> : vector<64xf32>
    %24 = vector.multi_reduction <add>, %23, %cst_17 [1] : vector<64x32xf32> to vector<64xf32>
    %25 = vector.shape_cast %24 : vector<64xf32> to vector<64x1xf32>
    %c0_18 = arith.constant 0 : index
    %c0_19 = arith.constant 0 : index
    %26 = vector.load %arg9[%c0_18, %c0_19] : memref<1x1xf32, #tpu.memory_space<vmem>>, vector<1x1xf32>
    %27 = vector.broadcast %26 : vector<1x1xf32> to vector<64x1xf32>
    %28 = arith.addf %25, %27 : vector<64x1xf32>
    %cst_20 = arith.constant dense<0xFF800000> : vector<1xf32>
    %29 = vector.multi_reduction <maximumf>, %28, %cst_20 [0] : vector<64x1xf32> to vector<1xf32>
    %30 = vector.shape_cast %29 : vector<1xf32> to vector<1x1xf32>
    %31 = vector.broadcast %30 : vector<1x1xf32> to vector<64x1xf32>
    %32 = arith.subf %28, %31 : vector<64x1xf32>
    %33 = math.exp %32 : vector<64x1xf32>
    %cst_21 = arith.constant dense<0.000000e+00> : vector<1xf32>
    %34 = vector.multi_reduction <add>, %33, %cst_21 [0] : vector<64x1xf32> to vector<1xf32>
    %35 = vector.shape_cast %34 : vector<1xf32> to vector<1x1xf32>
    %36 = vector.broadcast %35 : vector<1x1xf32> to vector<64x1xf32>
    %37 = arith.divf %33, %36 : vector<64x1xf32>
    %38 = vector.broadcast %37 : vector<64x1xf32> to vector<64x32xf32>
    %39 = arith.mulf %38, %1 : vector<64x32xf32>
    %cst_22 = arith.constant dense<0.000000e+00> : vector<32xf32>
    %40 = vector.multi_reduction <add>, %39, %cst_22 [0] : vector<64x32xf32> to vector<32xf32>
    %41 = vector.shape_cast %40 : vector<32xf32> to vector<1x32xf32>
    %c0_23 = arith.constant 0 : index
    %c0_24 = arith.constant 0 : index
    %c0_25 = arith.constant 0 : index
    %42 = vector.load %arg10[%c0_23, %c0_24, %c0_25] : memref<1x1x32xf32, #tpu.memory_space<vmem>>, vector<1x1x32xf32>
    %43 = vector.shape_cast %42 : vector<1x1x32xf32> to vector<1x32xf32>
    %44 = vector.shape_cast %41 : vector<1x32xf32> to vector<1x1x32xf32>
    tpu.vector_store %arg10[%c0_23, %c0_24, %c0_25], %44 {strides = array<i32>} : memref<1x1x32xf32, #tpu.memory_space<vmem>>, vector<1x1x32xf32>,
    return
  }
  func.func @transform_0(%arg0: i32, %arg1: memref<8xi32, #tpu.memory_space<smem>>) -> (i32, i32, i32) {
    %0 = arith.index_cast %arg0 : i32 to index
    %1 = memref.load %arg1[%0] : memref<8xi32, #tpu.memory_space<smem>>
    %c0_i32 = arith.constant 0 : i32
    %c0_i32_0 = arith.constant 0 : i32
    %c0_i32_1 = arith.constant 0 : i32
    return %1, %c0_i32, %c0_i32_0 : i32, i32, i32
  }
  func.func @transform_1(%arg0: i32, %arg1: memref<8xi32, #tpu.memory_space<smem>>) -> (i32, i32, i32) {
    %c0_i32 = arith.constant 0 : i32
    %c0_i32_0 = arith.constant 0 : i32
    %c0_i32_1 = arith.constant 0 : i32
    return %arg0, %c0_i32, %c0_i32_0 : i32, i32, i32
  }
  func.func @transform_2(%arg0: i32, %arg1: memref<8xi32, #tpu.memory_space<smem>>) -> (i32, i32) {
    %c0_i32 = arith.constant 0 : i32
    %c0_i32_0 = arith.constant 0 : i32
    %c0_i32_1 = arith.constant 0 : i32
    return %c0_i32, %c0_i32_0 : i32, i32
  }
  func.func @transform_3(%arg0: i32, %arg1: memref<8xi32, #tpu.memory_space<smem>>) -> (i32, i32) {
    %c0_i32 = arith.constant 0 : i32
    %c0_i32_0 = arith.constant 0 : i32
    %c0_i32_1 = arith.constant 0 : i32
    return %c0_i32, %c0_i32_0 : i32, i32
  }
  func.func @transform_4(%arg0: i32, %arg1: memref<8xi32, #tpu.memory_space<smem>>) -> (i32, i32) {
    %c0_i32 = arith.constant 0 : i32
    %c0_i32_0 = arith.constant 0 : i32
    %c0_i32_1 = arith.constant 0 : i32
    return %c0_i32, %c0_i32_0 : i32, i32
  }
  func.func @transform_5(%arg0: i32, %arg1: memref<8xi32, #tpu.memory_space<smem>>) -> (i32, i32) {
    %c0_i32 = arith.constant 0 : i32
    %c0_i32_0 = arith.constant 0 : i32
    %c0_i32_1 = arith.constant 0 : i32
    return %c0_i32, %c0_i32_0 : i32, i32
  }
  func.func @transform_6(%arg0: i32, %arg1: memref<8xi32, #tpu.memory_space<smem>>) -> (i32, i32) {
    %c0_i32 = arith.constant 0 : i32
    %c0_i32_0 = arith.constant 0 : i32
    %c0_i32_1 = arith.constant 0 : i32
    return %c0_i32, %c0_i32_0 : i32, i32
  }
  func.func @transform_7(%arg0: i32, %arg1: memref<8xi32, #tpu.memory_space<smem>>) -> (i32, i32) {
    %c0_i32 = arith.constant 0 : i32
    %c0_i32_0 = arith.constant 0 : i32
    %c0_i32_1 = arith.constant 0 : i32
    return %c0_i32, %c0_i32_0 : i32, i32
  }
  func.func @transform_8(%arg0: i32, %arg1: memref<8xi32, #tpu.memory_space<smem>>) -> (i32, i32, i32) {
    %c0_i32 = arith.constant 0 : i32
    %c0_i32_0 = arith.constant 0 : i32
    %c0_i32_1 = arith.constant 0 : i32
    return %arg0, %c0_i32, %c0_i32_0 : i32, i32, i32
  }
}

</mosaic_0001>

<llo_original>
// kernel: tpu_custom_call.1
$region0: #{tpu_custom_call.1}
  #allocation0 [shape = 'u32[]', space=smem, size = 0x4, offset = 0x4, fixed_abs, tag = 'smem constant byte address 0x4 - core index']
  #allocation1 [shape = 'u32[144,128]{1,0:T(1,128)}', space=vmem, size = 0x12000, scoped, tag = 'internal scratch']
  #allocation2 [shape = 's32[1]{0}', space=sflag, size = 0x4, scoped, tag = 'scoped memory for tpu_custom_call.1']
  #allocation3 [shape = 'u8[512]{0}', space=smem, size = 0x200, scoped, tag = 'prefetched SMEM operand 0']
  #allocation4 [shape = 'f32[1,1]{1,0:T(1,128)S(1)}', space=vmem, size = 0x200, scoped, tag = 'scoped memory for tpu_custom_call.1']
  %s0 = inlined_call_operand.vmem [shape: s32[8], index: 0, kind: input, shape index: {}]
  %s1 = inlined_call_operand.vmem [shape: f32[4,64,32], index: 1, kind: input, shape index: {}]
  %s2 = inlined_call_operand.vmem [shape: f32[8,1,64], index: 2, kind: input, shape index: {}]
  %s3 = inlined_call_operand.vmem [shape: f32[32,32], index: 3, kind: input, shape index: {}]
  %s4 = inlined_call_operand.vmem [shape: f32[1,32], index: 4, kind: input, shape index: {}]
  %s5 = inlined_call_operand.vmem [shape: f32[64,32], index: 5, kind: input, shape index: {}]
  %s6 = inlined_call_operand.vmem [shape: f32[1,32], index: 6, kind: input, shape index: {}]
  %s7 = inlined_call_operand.vmem [shape: f32[1,32], index: 7, kind: input, shape index: {}]
  %s8 = inlined_call_operand.<no memory space> [shape: f32[1,1], index: 8, kind: input, shape index: {}]
  %s9 = inlined_call_operand.hbm [shape: f32[8,1,32], index: 9, kind: output, shape index: {}]
  %s10 = sld [smem:[#allocation0]]
  $region65: #{tpu_custom_call.1} parent=0
    _
  %s12 = ssub.s32 1, %s10
  %s13 = scalar_select 0, %s12, %s10
  %s14 = sshll.u32 %s0, 4
  %s15 = int_to_ptr.vmem [resolvable:$true] %s14
  %17 = dma.vmem_to_smem %s15, 16, [#allocation3], [#allocation2]
  %v18 = vstv %s8
  %19 = vst [vmem:[#allocation4] sm:$0x1] %v18
  %20 = dma.done [#allocation2], 16
  %21 = sfence
  $region1: #{tpu_custom_call.1} parent=0
    #allocation5 [shape = 'u8[1024]{0}', space=vmem, size = 0x400, scoped, tag = 'output window, operand 0']
    #allocation6 [shape = 's32[2]{0}', space=sflag, size = 0x8, scoped, tag = 'scoped memory for tpu_custom_call.1']
    %22 = vsyncpa [#allocation6], 0
    %s23 = scalar_lea.sflag [#allocation6], 1
    %24 = vsyncpa %s23, 0
    loop: start=0, step=1, limit=10
    $region2: #{tpu_custom_call.1} parent=1 // loop_pre_header
      _
    $region3: #{tpu_custom_call.1} parent=1 // loop_header
      %s26 = sphi 0, %s30
      %p27 = scmp.ge.s32.totalorder %s26, 10
      %s38 = sphi 0, %s40
      %s41 = sphi 0, %s38
      %s42 = sphi 0, %s41
      %s58 = sphi 0, %s42
      %s64 = sphi 0, %s66
      %s67 = sphi 0, %s64
      %s68 = sphi 0, %s67
      %s84 = sphi 0, %s68
      %s88 = sphi 0, %s88
      %s90 = sphi 0, %s88
      %s91 = sphi 0, %s90
      %s105 = sphi 0, %s91
      %s109 = sphi 0, %s109
      %s111 = sphi 0, %s109
      %s112 = sphi 0, %s111
      %s126 = sphi 0, %s112
      %s130 = sphi 0, %s130
      %s132 = sphi 0, %s130
      %s133 = sphi 0, %s132
      %s147 = sphi 0, %s133
      %s151 = sphi 0, %s151
      %s153 = sphi 0, %s151
      %s154 = sphi 0, %s153
      %s168 = sphi 0, %s154
      %s172 = sphi 0, %s172
      %s174 = sphi 0, %s172
      %s175 = sphi 0, %s174
      %s189 = sphi 0, %s175
      %s193 = sphi 0, %s193
      %s195 = sphi 0, %s193
      %s196 = sphi 0, %s195
      %s210 = sphi 0, %s196
      %s216 = sphi 0, %s218
      %s219 = sphi 0, %s216
      %s220 = sphi 0, %s219
      %s236 = sphi 0, %s220
    $region4: #{tpu_custom_call.1} parent=1 // loop_header_branch
      %29 = sbr.rel (%p27) target = $region8
    $region5: #{tpu_custom_call.1} parent=1 // loop_body
      %s31 = ssub.s32 %s26, 1
      %s32 = ssub.s32 %s26, 2
      %s33 = sadd.s32 %s26, 1
      %s34 = sld [smem:[#allocation3 + %s26]]
      %s35 = sld [smem:[#allocation3 + %s33]]
      %s36 = ssub.s32 %s34, %s35
      %p37 = scmp.eq.s32.totalorder %s36, 0
      %s39 = sadd.s32 %s38, 1
      %s40 = scalar_select %p37, %s38, %s39
      %p43 = pneg %p37
      %p44 = scmp.eq.s32.totalorder %s26, 7
      %p45 = por %p43, %p44
      %p46 = scmp.ne.s32.totalorder %s38, %s41
      %p47 = scmp.eq.s32.totalorder %s26, 0
      %p48 = por %p46, %p47
      %p49 = scmp.ne.s32.totalorder %s38, %s41
      %p50 = scmp.eq.s32.totalorder %s31, 7
      %p51 = por %p49, %p50
      %p52 = scmp.ne.s32.totalorder %s41, %s42
      %p53 = scmp.eq.s32.totalorder %s31, 0
      %p54 = por %p52, %p53
      %p55 = scmp.ne.s32.totalorder %s41, %s42
      %p56 = scmp.eq.s32.totalorder %s32, 7
      %p57 = por %p55, %p56
      %p59 = scmp.ne.s32.totalorder %s42, %s58
      %p60 = scmp.eq.s32.totalorder %s32, 0
      %p61 = por %p59, %p60
      %s62 = ssub.s32 %s26, %s33
      %p63 = scmp.eq.s32.totalorder %s62, 0
      %s65 = sadd.s32 %s64, 1
      %s66 = scalar_select %p63, %s64, %s65
      %p69 = pneg %p63
      %p70 = scmp.eq.s32.totalorder %s26, 7
      %p71 = por %p69, %p70
      %p72 = scmp.ne.s32.totalorder %s64, %s67
      %p73 = scmp.eq.s32.totalorder %s26, 0
      %p74 = por %p72, %p73
      %p75 = scmp.ne.s32.totalorder %s64, %s67
      %p76 = scmp.eq.s32.totalorder %s31, 7
      %p77 = por %p75, %p76
      %p78 = scmp.ne.s32.totalorder %s67, %s68
      %p79 = scmp.eq.s32.totalorder %s31, 0
      %p80 = por %p78, %p79
      %p81 = scmp.ne.s32.totalorder %s67, %s68
      %p82 = scmp.eq.s32.totalorder %s32, 7
      %p83 = por %p81, %p82
      %p85 = scmp.ne.s32.totalorder %s68, %s84
      %p86 = scmp.eq.s32.totalorder %s32, 0
      %p87 = por %p85, %p86
      %s89 = sadd.s32 %s88, 1
      %p92 = scmp.eq.s32.totalorder %s26, 7
      %p93 = scmp.ne.s32.totalorder %s88, %s90
      %p94 = scmp.eq.s32.totalorder %s26, 0
      %p95 = por %p93, %p94
      %p96 = scmp.ne.s32.totalorder %s88, %s90
      %p97 = scmp.eq.s32.totalorder %s31, 7
      %p98 = por %p96, %p97
      %p99 = scmp.ne.s32.totalorder %s90, %s91
      %p100 = scmp.eq.s32.totalorder %s31, 0
      %p101 = por %p99, %p100
      %p102 = scmp.ne.s32.totalorder %s90, %s91
      %p103 = scmp.eq.s32.totalorder %s32, 7
      %p104 = por %p102, %p103
      %p106 = scmp.ne.s32.totalorder %s91, %s105
      %p107 = scmp.eq.s32.totalorder %s32, 0
      %p108 = por %p106, %p107
      %s110 = sadd.s32 %s109, 1
      %p113 = scmp.eq.s32.totalorder %s26, 7
      %p114 = scmp.ne.s32.totalorder %s109, %s111
      %p115 = scmp.eq.s32.totalorder %s26, 0
      %p116 = por %p114, %p115
      %p117 = scmp.ne.s32.totalorder %s109, %s111
      %p118 = scmp.eq.s32.totalorder %s31, 7
      %p119 = por %p117, %p118
      %p120 = scmp.ne.s32.totalorder %s111, %s112
      %p121 = scmp.eq.s32.totalorder %s31, 0
      %p122 = por %p120, %p121
      %p123 = scmp.ne.s32.totalorder %s111, %s112
      %p124 = scmp.eq.s32.totalorder %s32, 7
      %p125 = por %p123, %p124
      %p127 = scmp.ne.s32.totalorder %s112, %s126
      %p128 = scmp.eq.s32.totalorder %s32, 0
      %p129 = por %p127, %p128
      %s131 = sadd.s32 %s130, 1
      %p134 = scmp.eq.s32.totalorder %s26, 7
      %p135 = scmp.ne.s32.totalorder %s130, %s132
      %p136 = scmp.eq.s32.totalorder %s26, 0
      %p137 = por %p135, %p136
      %p138 = scmp.ne.s32.totalorder %s130, %s132
      %p139 = scmp.eq.s32.totalorder %s31, 7
      %p140 = por %p138, %p139
      %p141 = scmp.ne.s32.totalorder %s132, %s133
      %p142 = scmp.eq.s32.totalorder %s31, 0
      %p143 = por %p141, %p142
      %p144 = scmp.ne.s32.totalorder %s132, %s133
      %p145 = scmp.eq.s32.totalorder %s32, 7
      %p146 = por %p144, %p145
      %p148 = scmp.ne.s32.totalorder %s133, %s147
      %p149 = scmp.eq.s32.totalorder %s32, 0
      %p150 = por %p148, %p149
      %s152 = sadd.s32 %s151, 1
      %p155 = scmp.eq.s32.totalorder %s26, 7
      %p156 = scmp.ne.s32.totalorder %s151, %s153
      %p157 = scmp.eq.s32.totalorder %s26, 0
      %p158 = por %p156, %p157
      %p159 = scmp.ne.s32.totalorder %s151, %s153
      %p160 = scmp.eq.s32.totalorder %s31, 7
      %p161 = por %p159, %p160
      %p162 = scmp.ne.s32.totalorder %s153, %s154
      %p163 = scmp.eq.s32.totalorder %s31, 0
      %p164 = por %p162, %p163
      %p165 = scmp.ne.s32.totalorder %s153, %s154
      %p166 = scmp.eq.s32.totalorder %s32, 7
      %p167 = por %p165, %p166
      %p169 = scmp.ne.s32.totalorder %s154, %s168
      %p170 = scmp.eq.s32.totalorder %s32, 0
      %p171 = por %p169, %p170
      %s173 = sadd.s32 %s172, 1
      %p176 = scmp.eq.s32.totalorder %s26, 7
      %p177 = scmp.ne.s32.totalorder %s172, %s174
      %p178 = scmp.eq.s32.totalorder %s26, 0
      %p179 = por %p177, %p178
      %p180 = scmp.ne.s32.totalorder %s172, %s174
      %p181 = scmp.eq.s32.totalorder %s31, 7
      %p182 = por %p180, %p181
      %p183 = scmp.ne.s32.totalorder %s174, %s175
      %p184 = scmp.eq.s32.totalorder %s31, 0
      %p185 = por %p183, %p184
      %p186 = scmp.ne.s32.totalorder %s174, %s175
      %p187 = scmp.eq.s32.totalorder %s32, 7
      %p188 = por %p186, %p187
      %p190 = scmp.ne.s32.totalorder %s175, %s189
      %p191 = scmp.eq.s32.totalorder %s32, 0
      %p192 = por %p190, %p191
      %s194 = sadd.s32 %s193, 1
      %p197 = scmp.eq.s32.totalorder %s26, 7
      %p198 = scmp.ne.s32.totalorder %s193, %s195
      %p199 = scmp.eq.s32.totalorder %s26, 0
      %p200 = por %p198, %p199
      %p201 = scmp.ne.s32.totalorder %s193, %s195
      %p202 = scmp.eq.s32.totalorder %s31, 7
      %p203 = por %p201, %p202
      %p204 = scmp.ne.s32.totalorder %s195, %s196
      %p205 = scmp.eq.s32.totalorder %s31, 0
      %p206 = por %p204, %p205
      %p207 = scmp.ne.s32.totalorder %s195, %s196
      %p208 = scmp.eq.s32.totalorder %s32, 7
      %p209 = por %p207, %p208
      %p211 = scmp.ne.s32.totalorder %s196, %s210
      %p212 = scmp.eq.s32.totalorder %s32, 0
      %p213 = por %p211, %p212
      %s214 = ssub.s32 %s26, %s33
      %p215 = scmp.eq.s32.totalorder %s214, 0
      %s217 = sadd.s32 %s216, 1
      %s218 = scalar_select %p215, %s216, %s217
      %p221 = pneg %p215
      %p222 = scmp.eq.s32.totalorder %s26, 7
      %p223 = por %p221, %p222
      %p224 = scmp.ne.s32.totalorder %s216, %s219
      %p225 = scmp.eq.s32.totalorder %s26, 0
      %p226 = por %p224, %p225
      %p227 = scmp.ne.s32.totalorder %s216, %s219
      %p228 = scmp.eq.s32.totalorder %s31, 7
      %p229 = por %p227, %p228
      %p230 = scmp.ne.s32.totalorder %s219, %s220
      %p231 = scmp.eq.s32.totalorder %s31, 0
      %p232 = por %p230, %p231
      %p233 = scmp.ne.s32.totalorder %s219, %s220
      %p234 = scmp.eq.s32.totalorder %s32, 7
      %p235 = por %p233, %p234
      %p237 = scmp.ne.s32.totalorder %s220, %s236
      %p238 = scmp.eq.s32.totalorder %s32, 0
      %p239 = por %p237, %p238
      %p240 = scmp.le.s32.totalorder 1, %s26
      %p241 = scmp.lt.s32.totalorder %s26, 9
      %p242 = pnand %p240, %p241
      %p243 = pneg %p242
      // Predicated region
      $region9: #{tpu_custom_call.1} parent=5 // pred_check
        _
      $region10: #{tpu_custom_call.1} parent=5 // pred_check_branch
        %245 = sbr.rel (%p242) target = $region12
      $region11: #{tpu_custom_call.1} parent=5 // pred_region
        %s246 = ssub.s32 %s26, 1
        // Predicated region
        $region13: #{tpu_custom_call.1} parent=11 // pred_check
          %p247 = pneg %p101
        $region14: #{tpu_custom_call.1} parent=11 // pred_check_branch
          %249 = sbr.rel (%p247) target = $region16
        $region15: #{tpu_custom_call.1} parent=11 // pred_region
          _
        $region16: #{tpu_custom_call.1} parent=11 // pred_fallthru
          _
        // Predicated region
        $region17: #{tpu_custom_call.1} parent=11 // pred_check
          %p250 = pneg %p122
        $region18: #{tpu_custom_call.1} parent=11 // pred_check_branch
          %252 = sbr.rel (%p250) target = $region20
        $region19: #{tpu_custom_call.1} parent=11 // pred_region
          _
        $region20: #{tpu_custom_call.1} parent=11 // pred_fallthru
          _
        // Predicated region
        $region21: #{tpu_custom_call.1} parent=11 // pred_check
          %p253 = pneg %p143
        $region22: #{tpu_custom_call.1} parent=11 // pred_check_branch
          %255 = sbr.rel (%p253) target = $region24
        $region23: #{tpu_custom_call.1} parent=11 // pred_region
          _
        $region24: #{tpu_custom_call.1} parent=11 // pred_fallthru
          _
        // Predicated region
        $region25: #{tpu_custom_call.1} parent=11 // pred_check
          %p256 = pneg %p164
        $region26: #{tpu_custom_call.1} parent=11 // pred_check_branch
          %258 = sbr.rel (%p256) target = $region28
        $region27: #{tpu_custom_call.1} parent=11 // pred_region
          _
        $region28: #{tpu_custom_call.1} parent=11 // pred_fallthru
          _
        // Predicated region
        $region29: #{tpu_custom_call.1} parent=11 // pred_check
          %p259 = pneg %p185
        $region30: #{tpu_custom_call.1} parent=11 // pred_check_branch
          %261 = sbr.rel (%p259) target = $region32
        $region31: #{tpu_custom_call.1} parent=11 // pred_region
          _
        $region32: #{tpu_custom_call.1} parent=11 // pred_fallthru
          _
        // Predicated region
        $region33: #{tpu_custom_call.1} parent=11 // pred_check
          %p262 = pneg %p206
        $region34: #{tpu_custom_call.1} parent=11 // pred_check_branch
          %264 = sbr.rel (%p262) target = $region36
        $region35: #{tpu_custom_call.1} parent=11 // pred_region
          _
        $region36: #{tpu_custom_call.1} parent=11 // pred_fallthru
          _
      $region12: #{tpu_custom_call.1} parent=5 // pred_fallthru
        _
      %p265 = scmp.lt.s32.totalorder %s26, 8
      // Predicated region
      $region37: #{tpu_custom_call.1} parent=5 // pred_check
        %p266 = pneg %p265
      $region38: #{tpu_custom_call.1} parent=5 // pred_check_branch
        %268 = sbr.rel (%p266) target = $region40
      $region39: #{tpu_custom_call.1} parent=5 // pred_region
        // Predicated region
        $region41: #{tpu_custom_call.1} parent=39 // pred_check
          %p269 = pneg %p48
        $region42: #{tpu_custom_call.1} parent=39 // pred_check_branch
          %271 = sbr.rel (%p269) target = $region44
        $region43: #{tpu_custom_call.1} parent=39 // pred_region
          %s272 = sld [smem:[#allocation3 + %s26]]
          %p273 = scmp.lt.s32.totalorder %s272, 3
          %s274 = scalar_select %p273, %s272, 3
          %s275 = smul.addr %s274, 8
          %s276 = smul.addr %s275, 8
          %s277 = scalar_lea.vmem %s1, %s276
          %s278 = sld [smem:[#allocation3 + %s26]]
        $region44: #{tpu_custom_call.1} parent=39 // pred_fallthru
          _
        // Predicated region
        $region45: #{tpu_custom_call.1} parent=39 // pred_check
          %p279 = pneg %p74
        $region46: #{tpu_custom_call.1} parent=39 // pred_check_branch
          %281 = sbr.rel (%p279) target = $region48
        $region47: #{tpu_custom_call.1} parent=39 // pred_region
          %p282 = scmp.lt.s32.totalorder %s26, 7
          %s283 = scalar_select %p282, %s26, 7
          %s284 = scalar_lea.vmem %s2, %s283
        $region48: #{tpu_custom_call.1} parent=39 // pred_fallthru
          _
      $region40: #{tpu_custom_call.1} parent=5 // pred_fallthru
        _
      %p285 = scmp.le.s32.totalorder 1, %s26
      %p286 = scmp.lt.s32.totalorder %s26, 9
      %p287 = pnand %p285, %p286
      %p288 = pneg %p287
      // Predicated region
      $region49: #{tpu_custom_call.1} parent=5 // pred_check
        _
      $region50: #{tpu_custom_call.1} parent=5 // pred_check_branch
        %290 = sbr.rel (%p287) target = $region52
      $region51: #{tpu_custom_call.1} parent=5 // pred_region
        %s291 = ssub.s32 %s26, 1
        %s292 = sld [smem:[#allocation3 + %s31]]
        %p293 = scmp.lt.s32.totalorder %s292, 3
        %s294 = scalar_select %p293, %s292, 3
        %s295 = smul.addr %s294, 8
        %s296 = smul.addr %s295, 8
        %s297 = scalar_lea.vmem %s1, %s296
        %p298 = pneg %p54
        %p299 = pneg %p51
        %p300 = scmp.lt.s32.totalorder %s31, 7
        %s301 = scalar_select %p300, %s31, 7
        %s302 = scalar_lea.vmem %s2, %s301
        %p303 = pneg %p80
        %p304 = pneg %p77
        %p305 = pneg %p101
        %p306 = pneg %p98
        %p307 = pneg %p122
        %p308 = pneg %p119
        %p309 = pneg %p143
        %p310 = pneg %p140
        %p311 = pneg %p164
        %p312 = pneg %p161
        %p313 = pneg %p185
        %p314 = pneg %p182
        %p315 = pneg %p206
        %p316 = pneg %p203
        %p317 = pneg %p232
        %p318 = pneg %p229
        %s319 = sand.u32 %s219, 1
        %s320 = scalar_lea.sflag [#allocation6], %s319
        %s321 = sand.u32 %s219, 1
        %s322 = scalar_lea.vmem [#allocation5], %s321
        %s323 = sld [smem:[#allocation3 + %s31]]
        %p324 = scmp.lt.s32.totalorder %s323, 3
        %s325 = scalar_select %p324, %s323, 3
        %s326 = smul.addr %s325, 8
        %s327 = smul.addr %s326, 8
        %s328 = scalar_lea.vmem %s1, %s327
        %s329 = sld [smem:[#allocation3 + %s31]]
        %p330 = scmp.lt.s32.totalorder %s31, 7
        %s331 = scalar_select %p330, %s31, 7
        %s332 = scalar_lea.vmem %s2, %s331
        %v334 = vld [vmem:[%s328] sm:$0xff]
        %v335 = vld [vmem:[%s328 + $0x8] sm:$0xff]
        %v336 = vld [vmem:[%s328 + $0x10] sm:$0xff]
        %v337 = vld [vmem:[%s328 + $0x18] sm:$0xff]
        %v338 = vld [vmem:[%s328 + $0x20] sm:$0xff]
        %v339 = vld [vmem:[%s328 + $0x28] sm:$0xff]
        %v340 = vld [vmem:[%s328 + $0x30] sm:$0xff]
        %v341 = vld [vmem:[%s328 + $0x38] sm:$0xff]
        %v342 = vld [vmem:[%s332] sm:$0x1]
        %v343 = vpack.c.bf16 %v335, %v334
        %v344 = vpack.c.bf16 %v337, %v336
        %v345 = vpack.c.bf16 %v339, %v338
        %v346 = vpack.c.bf16 %v341, %v340
        %v347 = vld [vmem:[%s3] sm:$0xff]
        %v348 = vld [vmem:[%s3 + $0x8] sm:$0xff]
        %v349 = vld [vmem:[%s3 + $0x10] sm:$0xff]
        %v350 = vld [vmem:[%s3 + $0x18] sm:$0xff]
        %v351 = vpack.c.bf16 %v348, %v347
        %v352 = vpack.c.bf16 %v350, %v349
        %v353 = vld [vmem:[%s4] sm:$0x1]
        %v355 = vlaneseq
        %v356 = vshrl.u32 %v355, 7
        %v357 = vsub.s32 0, %v356
        %v358 = vrot.slane %v353, %v357
        %vm360 = vcmask 261120
        %v362 = vsel %vm360, %v343, 0
        %v365 = vsel %vm360, %v344, 0
        %v368 = vsel %vm360, %v345, 0
        %v371 = vsel %vm360, %v346, 0
        %373 = vmatprep.subr.bf16.mxu0 0
        %374 = vmatpush1.bf16.msra.mxu0 0
        %375 = vmatprep.subr.bf16.mxu0 0
        %376 = vmatpush1.bf16.msra.mxu0 0
        %377 = vmatprep.subr.bf16.mxu0 0
        %378 = vmatpush1.bf16.msra.mxu0 0
        %379 = vmatprep.subr.bf16.mxu0 0
        %380 = vmatpush1.bf16.msra.mxu0 0
        %381 = vmatprep.subr.bf16.mxu0 0
        %382 = vmatpush1.bf16.msra.mxu0 0
        %383 = vmatprep.subr.bf16.mxu0 0
        %384 = vmatpush1.bf16.msra.mxu0 0
        %385 = vmatprep.subr.bf16.mxu0 0
        %386 = vmatpush1.bf16.msra.mxu0 %v352
        %387 = vmatprep.subr.bf16.mxu0 0
        %388 = vmatpush1.bf16.msra.mxu0 %v351
        %389 = vmatprep.subr.bf16.mxu0 0
        %390 = vmatpush2.bf16.msra.mxu0 0
        %391 = vmatprep.subr.bf16.mxu0 0
        %392 = vmatpush2.bf16.msra.mxu0 0
        %393 = vmatprep.subr.bf16.mxu0 0
        %394 = vmatpush2.bf16.msra.mxu0 0
        %395 = vmatprep.subr.bf16.mxu0 0
        %396 = vmatpush2.bf16.msra.mxu0 0
        %397 = vmatprep.subr.bf16.mxu0 0
        %398 = vmatpush2.bf16.msra.mxu0 0
        %399 = vmatprep.subr.bf16.mxu0 0
        %400 = vmatpush2.bf16.msra.mxu0 0
        %401 = vmatprep.subr.bf16.mxu0 0
        %402 = vmatpush2.bf16.msra.mxu0 0
        %403 = vmatprep.subr.bf16.mxu0 0
        %404 = vmatpush2.bf16.msra.mxu0 0
        %405 = vmatprep.mubr.bf16.mxu0 0
        %406 = vmatmul.mubr.bf16.gmra.mxu0 %v362
        %v407 = vpop.f32.mrf.mxu0
        %v408 = vadd.f32 %v358, %v407
        %v409 = vpop.f32.mrf.mxu0
        %v410 = vpop.f32.mrf.mxu0
        %v411 = vadd.f32 %v358, %v410
        %v412 = vpop.f32.mrf.mxu0
        %413 = vmatprep.mubr.bf16.mxu0 0
        %414 = vmatmul.mubr.bf16.gmra.mxu0 %v365
        %v415 = vpop.f32.mrf.mxu0
        %v416 = vadd.f32 %v358, %v415
        %v417 = vpop.f32.mrf.mxu0
        %v418 = vpop.f32.mrf.mxu0
        %v419 = vadd.f32 %v358, %v418
        %v420 = vpop.f32.mrf.mxu0
        %421 = vmatprep.mubr.bf16.mxu0 0
        %422 = vmatmul.mubr.bf16.gmra.mxu0 %v368
        %v423 = vpop.f32.mrf.mxu0
        %v424 = vadd.f32 %v358, %v423
        %v425 = vpop.f32.mrf.mxu0
        %v426 = vpop.f32.mrf.mxu0
        %v427 = vadd.f32 %v358, %v426
        %v428 = vpop.f32.mrf.mxu0
        %429 = vmatprep.mubr.bf16.mxu0 0
        %430 = vmatmul.mubr.bf16.gmra.mxu0 %v371
        %v431 = vpop.f32.mrf.mxu0
        %v432 = vadd.f32 %v358, %v431
        %v433 = vpop.f32.mrf.mxu0
        %v434 = vpop.f32.mrf.mxu0
        %v435 = vadd.f32 %v358, %v434
        %v436 = vpop.f32.mrf.mxu0
        %437 = vdwg.mxu0
        %v438 = vpack.c.bf16 %v342, %v342
        %v439 = vld [vmem:[%s5] sm:$0xff]
        %v440 = vld [vmem:[%s5 + $0x8] sm:$0xff]
        %v441 = vld [vmem:[%s5 + $0x10] sm:$0xff]
        %v442 = vld [vmem:[%s5 + $0x18] sm:$0xff]
        %v443 = vld [vmem:[%s5 + $0x20] sm:$0xff]
        %v444 = vld [vmem:[%s5 + $0x28] sm:$0xff]
        %v445 = vld [vmem:[%s5 + $0x30] sm:$0xff]
        %v446 = vld [vmem:[%s5 + $0x38] sm:$0xff]
        %v447 = vpack.c.bf16 %v440, %v439
        %v448 = vpack.c.bf16 %v442, %v441
        %v449 = vpack.c.bf16 %v444, %v443
        %v450 = vpack.c.bf16 %v446, %v445
        %v451 = vld [vmem:[%s6] sm:$0x1]
        %vm452 = vcmask 523264
        %v454 = vsel %vm452, %v438, 0
        %456 = vmatprep.subr.bf16.mxu0 0
        %457 = vmatpush1.bf16.msra.mxu0 0
        %458 = vmatprep.subr.bf16.mxu0 0
        %459 = vmatpush1.bf16.msra.mxu0 0
        %460 = vmatprep.subr.bf16.mxu0 0
        %461 = vmatpush1.bf16.msra.mxu0 0
        %462 = vmatprep.subr.bf16.mxu0 0
        %463 = vmatpush1.bf16.msra.mxu0 0
        %464 = vmatprep.subr.bf16.mxu0 0
        %465 = vmatpush1.bf16.msra.mxu0 %v450
        %466 = vmatprep.subr.bf16.mxu0 0
        %467 = vmatpush1.bf16.msra.mxu0 %v449
        %468 = vmatprep.subr.bf16.mxu0 0
        %469 = vmatpush1.bf16.msra.mxu0 %v448
        %470 = vmatprep.subr.bf16.mxu0 0
        %471 = vmatpush1.bf16.msra.mxu0 %v447
        %472 = vmatprep.subr.bf16.mxu0 0
        %473 = vmatpush2.bf16.msra.mxu0 0
        %474 = vmatprep.subr.bf16.mxu0 0
        %475 = vmatpush2.bf16.msra.mxu0 0
        %476 = vmatprep.subr.bf16.mxu0 0
        %477 = vmatpush2.bf16.msra.mxu0 0
        %478 = vmatprep.subr.bf16.mxu0 0
        %479 = vmatpush2.bf16.msra.mxu0 0
        %480 = vmatprep.subr.bf16.mxu0 0
        %481 = vmatpush2.bf16.msra.mxu0 0
        %482 = vmatprep.subr.bf16.mxu0 0
        %483 = vmatpush2.bf16.msra.mxu0 0
        %484 = vmatprep.subr.bf16.mxu0 0
        %485 = vmatpush2.bf16.msra.mxu0 0
        %486 = vmatprep.subr.bf16.mxu0 0
        %487 = vmatpush2.bf16.msra.mxu0 0
        %488 = vmatprep.mubr.bf16.mxu0 0
        %489 = vmatmul.mubr.bf16.gmra.mxu0 %v454
        %v490 = vpop.f32.mrf.mxu0
        %v491 = vadd.f32 %v451, %v490
        %v492 = vpop.f32.mrf.mxu0
        %v493 = vpop.f32.mrf.mxu0
        %v494 = vpop.f32.mrf.mxu0
        %495 = vdwg.mxu0
        %v496 = vlaneseq
        %v497 = vshrl.u32 %v496, 7
        %v498 = vsub.s32 0, %v497
        %v499 = vrot.slane %v491, %v498
        %v500 = vadd.f32 %v408, %v499
        %v501 = vadd.f32 %v411, %v499
        %v502 = vadd.f32 %v416, %v499
        %v503 = vadd.f32 %v419, %v499
        %v504 = vadd.f32 %v424, %v499
        %v505 = vadd.f32 %v427, %v499
        %v506 = vadd.f32 %v432, %v499
        %v507 = vadd.f32 %v435, %v499
        %v508 = vmax.f32 %v500, 0.0
        %v509 = vmax.f32 %v501, 0.0
        %v510 = vmax.f32 %v502, 0.0
        %v511 = vmax.f32 %v503, 0.0
        %v512 = vmax.f32 %v504, 0.0
        %v513 = vmax.f32 %v505, 0.0
        %v514 = vmax.f32 %v506, 0.0
        %v515 = vmax.f32 %v507, 0.0
        %v516 = vld [vmem:[%s7] sm:$0x1]
        %v518 = vlaneseq
        %v519 = vshrl.u32 %v518, 7
        %v520 = vsub.s32 0, %v519
        %v521 = vrot.slane %v516, %v520
        %v523 = vmul.f32 %v508, %v521
        %v524 = vmul.f32 %v509, %v521
        %v525 = vmul.f32 %v510, %v521
        %v526 = vmul.f32 %v511, %v521
        %v527 = vmul.f32 %v512, %v521
        %v528 = vmul.f32 %v513, %v521
        %v529 = vmul.f32 %v514, %v521
        %v530 = vmul.f32 %v515, %v521
        %v531 = vsel %vm360, %v523, 0.0
        %532 = vadd.xlane.f32.xlu0 %v531
        %v533 = vpop.xlane.xlu0 %532
        %v534 = vsel %vm360, %v524, 0.0
        %535 = vadd.xlane.f32.xlu0 %v534
        %v536 = vpop.xlane.xlu0 %535
        %v537 = vsel %vm360, %v525, 0.0
        %538 = vadd.xlane.f32.xlu0 %v537
        %v539 = vpop.xlane.xlu0 %538
        %v540 = vsel %vm360, %v526, 0.0
        %541 = vadd.xlane.f32.xlu0 %v540
        %v542 = vpop.xlane.xlu0 %541
        %v543 = vsel %vm360, %v527, 0.0
        %544 = vadd.xlane.f32.xlu0 %v543
        %v545 = vpop.xlane.xlu0 %544
        %v546 = vsel %vm360, %v528, 0.0
        %547 = vadd.xlane.f32.xlu0 %v546
        %v548 = vpop.xlane.xlu0 %547
        %v549 = vsel %vm360, %v529, 0.0
        %550 = vadd.xlane.f32.xlu0 %v549
        %v551 = vpop.xlane.xlu0 %550
        %v552 = vsel %vm360, %v530, 0.0
        %553 = vadd.xlane.f32.xlu0 %v552
        %v554 = vpop.xlane.xlu0 %553
        %v555 = vld [vmem:[#allocation4] sm:$0x1]
        %v557 = vlaneseq
        %v558 = vshrl.u32 %v557, 7
        %v559 = vsub.s32 0, %v558
        %v560 = vrot.slane %v555, %v559
        %v562 = vadd.f32 %v533, %v560
        %v563 = vadd.f32 %v536, %v560
        %v564 = vadd.f32 %v539, %v560
        %v565 = vadd.f32 %v542, %v560
        %v566 = vadd.f32 %v545, %v560
        %v567 = vadd.f32 %v548, %v560
        %v568 = vadd.f32 %v551, %v560
        %v569 = vadd.f32 %v554, %v560
        %vm570 = vcmask 7168
        %v571 = vsel %vm570, %v562, -inf
        %v572 = vsel %vm570, %v563, -inf
        %v573 = vsel %vm570, %v564, -inf
        %v574 = vsel %vm570, %v565, -inf
        %v575 = vsel %vm570, %v566, -inf
        %v576 = vmax.f32 %v571, %v575
        %v577 = vsel %vm570, %v567, -inf
        %v578 = vmax.f32 %v572, %v577
        %v579 = vsel %vm570, %v568, -inf
        %v580 = vmax.f32 %v573, %v579
        %v581 = vsel %vm570, %v569, -inf
        %v582 = vmax.f32 %v574, %v581
        %v583 = vmax.f32 %v576, %v578
        %v584 = vmax.f32 %v580, %v582
        %v585 = vmax.f32 %v583, %v584
        %v586 = vrot.slane %v585, 4
        %v587 = vmax.f32 %v585, %v586
        %v588 = vrot.slane %v587, 2
        %v589 = vmax.f32 %v587, %v588
        %v590 = vrot.slane %v589, 1
        %v591 = vmax.f32 %v589, %v590
        %v592 = vsub.f32 %v562, %v591
        %v593 = vsub.f32 %v563, %v591
        %v594 = vsub.f32 %v564, %v591
        %v595 = vsub.f32 %v565, %v591
        %v596 = vsub.f32 %v566, %v591
        %v597 = vsub.f32 %v567, %v591
        %v598 = vsub.f32 %v568, %v591
        %v599 = vsub.f32 %v569, %v591
        %v600 = vmul.f32 %v592, 1.442695
        %v601 = vpow.pop %v600
        %v602 = vmul.f32 %v593, 1.442695
        %v603 = vpow.pop %v602
        %v604 = vmul.f32 %v594, 1.442695
        %v605 = vpow.pop %v604
        %v606 = vmul.f32 %v595, 1.442695
        %v607 = vpow.pop %v606
        %v608 = vmul.f32 %v596, 1.442695
        %v609 = vpow.pop %v608
        %v610 = vmul.f32 %v597, 1.442695
        %v611 = vpow.pop %v610
        %v612 = vmul.f32 %v598, 1.442695
        %v613 = vpow.pop %v612
        %v614 = vmul.f32 %v599, 1.442695
        %v615 = vpow.pop %v614
        %v616 = vsel %vm570, %v601, 0.0
        %v617 = vsel %vm570, %v603, 0.0
        %v618 = vadd.f32 %v616, %v617
        %v619 = vsel %vm570, %v605, 0.0
        %v620 = vadd.f32 %v618, %v619
        %v621 = vsel %vm570, %v607, 0.0
        %v622 = vadd.f32 %v620, %v621
        %v623 = vsel %vm570, %v609, 0.0
        %v624 = vadd.f32 %v622, %v623
        %v625 = vsel %vm570, %v611, 0.0
        %v626 = vadd.f32 %v624, %v625
        %v627 = vsel %vm570, %v613, 0.0
        %v628 = vadd.f32 %v626, %v627
        %v629 = vsel %vm570, %v615, 0.0
        %v630 = vadd.f32 %v628, %v629
        %v631 = vrot.slane %v630, 4
        %v632 = vadd.f32 %v630, %v631
        %v633 = vrot.slane %v632, 2
        %v634 = vadd.f32 %v632, %v633
        %v635 = vrot.slane %v634, 1
        %v636 = vadd.f32 %v634, %v635
        %v637 = vrcp.pop %v636
        %v638 = vmul.f32 %v601, %v637
        %v639 = vmul.f32 %v603, %v637
        %v640 = vmul.f32 %v605, %v637
        %v641 = vmul.f32 %v607, %v637
        %v642 = vmul.f32 %v609, %v637
        %v643 = vmul.f32 %v611, %v637
        %v644 = vmul.f32 %v613, %v637
        %v645 = vmul.f32 %v615, %v637
        %647 = vset.pattern.permute.xlu0 0
        %648 = vperm.xlu0 %647, %v638
        %v649 = vpop.permute.xlu0 %648
        %652 = vset.pattern.permute.xlu0 0
        %653 = vperm.xlu0 %652, %v639
        %v654 = vpop.permute.xlu0 %653
        %657 = vset.pattern.permute.xlu0 0
        %658 = vperm.xlu0 %657, %v640
        %v659 = vpop.permute.xlu0 %658
        %662 = vset.pattern.permute.xlu0 0
        %663 = vperm.xlu0 %662, %v641
        %v664 = vpop.permute.xlu0 %663
        %667 = vset.pattern.permute.xlu0 0
        %668 = vperm.xlu0 %667, %v642
        %v669 = vpop.permute.xlu0 %668
        %672 = vset.pattern.permute.xlu0 0
        %673 = vperm.xlu0 %672, %v643
        %v674 = vpop.permute.xlu0 %673
        %677 = vset.pattern.permute.xlu0 0
        %678 = vperm.xlu0 %677, %v644
        %v679 = vpop.permute.xlu0 %678
        %682 = vset.pattern.permute.xlu0 0
        %683 = vperm.xlu0 %682, %v645
        %v684 = vpop.permute.xlu0 %683
        %v686 = vmul.f32 %v649, %v334
        %v687 = vmul.f32 %v654, %v335
        %v688 = vmul.f32 %v659, %v336
        %v689 = vmul.f32 %v664, %v337
        %v690 = vmul.f32 %v669, %v338
        %v691 = vmul.f32 %v674, %v339
        %v692 = vmul.f32 %v679, %v340
        %v693 = vmul.f32 %v684, %v341
        %v694 = vsel %vm360, %v686, 0.0
        %v695 = vsel %vm360, %v687, 0.0
        %v696 = vadd.f32 %v694, %v695
        %v697 = vsel %vm360, %v688, 0.0
        %v698 = vadd.f32 %v696, %v697
        %v699 = vsel %vm360, %v689, 0.0
        %v700 = vadd.f32 %v698, %v699
        %v701 = vsel %vm360, %v690, 0.0
        %v702 = vadd.f32 %v700, %v701
        %v703 = vsel %vm360, %v691, 0.0
        %v704 = vadd.f32 %v702, %v703
        %v705 = vsel %vm360, %v692, 0.0
        %v706 = vadd.f32 %v704, %v705
        %v707 = vsel %vm360, %v693, 0.0
        %v708 = vadd.f32 %v706, %v707
        %v709 = vrot.slane %v708, 4
        %v710 = vadd.f32 %v708, %v709
        %v711 = vrot.slane %v710, 2
        %v712 = vadd.f32 %v710, %v711
        %v713 = vrot.slane %v712, 1
        %v714 = vadd.f32 %v712, %v713
        %vm715 = vcmask 253952
        %716 = vst.msk [vmem:[%s322] sm:$0x1] %vm715, %v714
        %s717 = sand.u32 %s219, 1
        %s718 = scalar_lea.sflag [#allocation6], %s717
        %s719 = sand.u32 %s219, 1
        %s720 = scalar_lea.vmem [#allocation5], %s719
        // Predicated region
        $region53: #{tpu_custom_call.1} parent=51 // pred_check
          %p721 = pneg %p229
        $region54: #{tpu_custom_call.1} parent=51 // pred_check_branch
          %723 = sbr.rel (%p721) target = $region56
        $region55: #{tpu_custom_call.1} parent=51 // pred_region
          %s725 = ssub.s32 16, 16
          %726 = vsyncadd %s718, %s725
          %s727 = smul.addr %s31, 16
          %s728 = scalar_lea.hbm %s9, %s727
          %s730 = sshll.u32 %s720, 4
          %s731 = int_to_ptr.vmem [resolvable:$true] %s730
          %733 = dma.vmem_to_hbm [thread:$0]  %s731, 16, %s728, %s718
        $region56: #{tpu_custom_call.1} parent=51 // pred_fallthru
          _
      $region52: #{tpu_custom_call.1} parent=5 // pred_fallthru
        _
      %p734 = scmp.le.s32.totalorder 2, %s26
      // Predicated region
      $region57: #{tpu_custom_call.1} parent=5 // pred_check
        %p735 = pneg %p734
      $region58: #{tpu_custom_call.1} parent=5 // pred_check_branch
        %737 = sbr.rel (%p735) target = $region60
      $region59: #{tpu_custom_call.1} parent=5 // pred_region
        %s738 = ssub.s32 %s26, 2
        // Predicated region
        $region61: #{tpu_custom_call.1} parent=59 // pred_check
          %p739 = pneg %p235
        $region62: #{tpu_custom_call.1} parent=59 // pred_check_branch
          %741 = sbr.rel (%p739) target = $region64
        $region63: #{tpu_custom_call.1} parent=59 // pred_region
          %s742 = sand.u32 %s220, 1
          %s743 = scalar_lea.sflag [#allocation6], %s742
          %s744 = sand.u32 %s220, 1
          %s745 = scalar_lea.vmem [#allocation5], %s744
          %746 = dma.done %s743, 16
        $region64: #{tpu_custom_call.1} parent=59 // pred_fallthru
          _
      $region60: #{tpu_custom_call.1} parent=5 // pred_fallthru
        _
    $region6: #{tpu_custom_call.1} parent=1 // loop_footer
      %s30 = sadd.s32 1, %s26
    $region7: #{tpu_custom_call.1} parent=1 // loop_footer_branch
      %25 = sbr.rel target = $region3
    $region8: #{tpu_custom_call.1} parent=1 // loop_exit
      _
    %747 = vsyncpa [#allocation6], 1
    %s748 = scalar_lea.sflag [#allocation6], 1
    %749 = vsyncpa %s748, 1

</llo_original>
